<compile_context>
chip_gen: v7x
topology: tpu7x:2x2x1
jax: 0.10.0
libtpu: 0.0.40
codegen_flags: <defaults>
</compile_context>

<pallas_src>
import functools

import jax
import jax.numpy as jnp
from jax import lax
from jax.experimental import pallas as pl
from jax.experimental.pallas import tpu as pltpu

_SUBLANE = 8
_LANE = 128
_MAX_BLK_ROWS = 4096  # (4096, 128) f32 = 2 MiB per input per pipeline buffer


def _bce_sum_kernel(pre_ref, lab_ref, out_ref, *, blk_rows, blocks_per_core,
                    valid_rows):
    c = pl.program_id(0)  # core / parallel axis
    i = pl.program_id(1)  # reduction axis (sequential per core)

    # Zero this core's resident (8, 128) accumulator slice on its first step.
    @pl.when(i == 0)
    def _():
        out_ref[...] = jnp.zeros_like(out_ref)

    p = pre_ref[...].astype(jnp.float32)
    y = lab_ref[...].astype(jnp.float32)

    # PyTorch BCELoss clamps each log term at -100; log1p(-p) matches torch's
    # (1 - p) term.  per_elem is the POSITIVE form y*(lp - l1mp) + l1mp; the
    # global minus sign is applied once in the wrapper (saves a mul, a sub and
    # a negate per element).  Keep the clamp BEFORE any multiply: that is what
    # makes (pre=1, label=1) lane-padding contribute exactly 0 (100 - 100).
    log_p = jnp.maximum(jnp.log(p), -100.0)
    log_1mp = jnp.maximum(jnp.log1p(-p), -100.0)
    per_elem = y * (log_p - log_1mp) + log_1mp

    # Global (unclamped) block index -> first row covered by this block.
    g = c * blocks_per_core + i
    row0 = g * blk_rows
    is_tail = row0 + blk_rows > valid_rows  # partially or fully out of range

    def fold(x):
        # (blk_rows, 128) -> (8, 128) partial sum: layout-preserving reshape,
        # pure VPU adds.  The cross-lane reduce is deferred to the wrapper.
        return x.reshape(blk_rows // _SUBLANE, _SUBLANE, _LANE).sum(axis=0)

    @pl.when(jnp.logical_not(is_tail))
    def _():
        out_ref[...] += fold(per_elem)

    @pl.when(is_tail)
    def _():
        # Only the tail block pays for the mask; garbage rows (and the
        # duplicated clamped block of a fully out-of-range grid point) are
        # selected to exactly 0 (jnp.where selects, so NaNs in the dead
        # branch are harmless).
        ridx = row0 + lax.broadcasted_iota(jnp.int32, (blk_rows, _LANE), 0)
        out_ref[...] += fold(jnp.where(ridx < valid_rows, per_elem, 0.0))


def bce_loss_pallas(pre, label, rep_anchor=None, rep_candidate=None):
    """Equivalent of bceLoss.forward: BCELoss(pre, label), mean reduction.

    rep_anchor / rep_candidate are accepted (and ignored) to mirror the
    PyTorch module's signature.
    """
    pre = jnp.asarray(pre)
    label = jnp.asarray(label)

    pre_f = pre.reshape(-1)
    lab_f = label.reshape(-1)
    n = pre_f.shape[0]

    # Lane padding only: at most 127 neutral (pre=1, label=1) elements, and
    # only when n is not already a multiple of 128 (the demo shape needs no
    # pad at all).  The block/row tail is masked inside the kernel, so no
    # whole-array pad copy is ever materialized for it.
    rem = n % _LANE
    if rem:
        pad = _LANE - rem
        pre_f = jnp.pad(pre_f, (0, pad), constant_values=1)
        lab_f = jnp.pad(lab_f, (0, pad), constant_values=1)
    rows = pre_f.shape[0] // _LANE  # static under jit

    pre_t = pre_f.reshape(rows, _LANE)  # contiguous reshape: no copy
    lab_t = lab_f.reshape(rows, _LANE)

    blk_rows = min(_MAX_BLK_ROWS, pl.cdiv(rows, _SUBLANE) * _SUBLANE)
    n_blocks = pl.cdiv(rows, blk_rows)

    # Split the sequential reduction across both TensorCores on v7x; the
    # parallel axis degenerates to an outer loop on single-TC v5e/v6e.
    num_cores = 2 if n_blocks >= 2 else 1
    blocks_per_core = pl.cdiv(n_blocks, num_cores)

    def in_map(c, i):
        # Clamp so a fully out-of-range grid point (odd n_blocks) just
        # re-reads the last valid block; the kernel masks it to zero.
        return (jnp.minimum(c * blocks_per_core + i, n_blocks - 1), 0)

    blk_spec = pl.BlockSpec((blk_rows, _LANE), in_map)
    out_spec = pl.BlockSpec((None, _SUBLANE, _LANE), lambda c, i: (c, 0, 0))

    total = rows * _LANE
    cost = pl.CostEstimate(
        flops=6 * total,
        transcendentals=2 * total,
        bytes_accessed=int(
            total * (pre.dtype.itemsize + label.dtype.itemsize)
            + num_cores * _SUBLANE * _LANE * 4),
    )

    partials = pl.pallas_call(
        functools.partial(_bce_sum_kernel, blk_rows=blk_rows,
                          blocks_per_core=blocks_per_core, valid_rows=rows),
        out_shape=jax.ShapeDtypeStruct((num_cores, _SUBLANE, _LANE),
                                       jnp.float32),
        grid_spec=pltpu.PrefetchScalarGridSpec(
            num_scalar_prefetch=0,
            grid=(num_cores, blocks_per_core),
            in_specs=[blk_spec, blk_spec],
            out_specs=out_spec,
        ),
        compiler_params=pltpu.CompilerParams(
            dimension_semantics=("parallel", "arbitrary"),
            vmem_limit_bytes=32 * 1024 * 1024),
        cost_estimate=cost,
    )(pre_t, lab_t)

    # Single cross-lane reduce + global minus sign + mean, once per call.
    return -jnp.sum(partials) / jnp.float32(n)


if __name__ == "__main__":
    key = jax.random.PRNGKey(0)
    k1, k2 = jax.random.split(key)

    # Small shapes: batch=2, channels=4, spatial=16x16 (elementwise BCE works
    # on any shape; flattened inside the wrapper).
    shape = (2, 4, 16, 16)
    pre = jax.nn.sigmoid(jax.random.normal(k1, shape, jnp.float32))
    label = (jax.random.uniform(k2, shape) > 0.5).astype(jnp.float32)
    # rep_anchor / rep_candidate are unused by the forward pass.
    rep_anchor = jnp.zeros((2, 32), jnp.float32)
    rep_candidate = jnp.zeros((2, 32), jnp.float32)

    loss = bce_loss_pallas(pre, label, rep_anchor, rep_candidate)
    jax.block_until_ready(loss)

    # Reference check in plain JAX (same clamp as PyTorch BCELoss).
    log_p = jnp.maximum(jnp.log(pre), -100.0)
    log_1mp = jnp.maximum(jnp.log1p(-pre), -100.0)
    ref = jnp.mean(-(label * log_p + (1.0 - label) * log_1mp))
    assert jnp.allclose(loss, ref, rtol=1e-5, atol=1e-5), (loss, ref)

    print("KERNEL_OK")
</pallas_src>

<mosaic_0001>
module attributes {stable_mosaic.version = 11 : i64} {
  func.func @_bce_sum_kernel(%arg0: i32, %arg1: i32, %arg2: memref<16x128xf32, #tpu.memory_space<vmem>>, %arg3: memref<16x128xf32, #tpu.memory_space<vmem>>, %arg4: memref<1x8x128xf32, #tpu.memory_space<vmem>>) attributes {dimension_semantics = [#tpu.dimension_semantics<parallel>, #tpu.dimension_semantics<arbitrary>], iteration_bounds = array<i64: 1, 1>, scalar_prefetch = 0 : i64, scratch_operands = 0 : i64, tpu.core_type = #tpu.core_type<tc>, window_params = [{transform_indices = @transform_0, window_bounds = array<i64: 16, 128>}, {transform_indices = @transform_1, window_bounds = array<i64: 16, 128>}, {transform_indices = @transform_2, window_bounds = array<i64: 1, 8, 128>}]} {
    %c0_i32 = arith.constant 0 : i32
    %0 = arith.cmpi eq, %arg1, %c0_i32 : i32
    %1 = arith.extui %0 : i1 to i32
    %c0_i32_0 = arith.constant 0 : i32
    %2 = arith.cmpi ne, %1, %c0_i32_0 : i32
    scf.if %2 {
      %cst_10 = arith.constant 0.000000e+00 : f32
      %26 = vector.broadcast %cst_10 : f32 to vector<8x128xf32>
      %c0_11 = arith.constant 0 : index
      %c0_12 = arith.constant 0 : index
      %c0_13 = arith.constant 0 : index
      %27 = vector.load %arg4[%c0_11, %c0_12, %c0_13] : memref<1x8x128xf32, #tpu.memory_space<vmem>>, vector<1x8x128xf32>
      %28 = vector.shape_cast %27 : vector<1x8x128xf32> to vector<8x128xf32>
      %29 = vector.shape_cast %26 : vector<8x128xf32> to vector<1x8x128xf32>
      tpu.vector_store %arg4[%c0_11, %c0_12, %c0_13], %29 {strides = array<i32>} : memref<1x8x128xf32, #tpu.memory_space<vmem>>, vector<1x8x128xf32>,
    } else {
    }
    %c0 = arith.constant 0 : index
    %c0_1 = arith.constant 0 : index
    %3 = vector.load %arg2[%c0, %c0_1] : memref<16x128xf32, #tpu.memory_space<vmem>>, vector<16x128xf32>
    %c0_2 = arith.constant 0 : index
    %c0_3 = arith.constant 0 : index
    %4 = vector.load %arg3[%c0_2, %c0_3] : memref<16x128xf32, #tpu.memory_space<vmem>>, vector<16x128xf32>
    %5 = math.log %3 : vector<16x128xf32>
    %cst = arith.constant -1.000000e+02 : f32
    %6 = vector.broadcast %cst : f32 to vector<16x128xf32>
    %7 = arith.maximumf %5, %6 : vector<16x128xf32>
    %cst_4 = arith.constant 0.000000e+00 : f32
    %8 = vector.broadcast %cst_4 : f32 to vector<16x128xf32>
    %9 = arith.subf %8, %3 : vector<16x128xf32>
    %10 = math.log1p %9 : vector<16x128xf32>
    %cst_5 = arith.constant -1.000000e+02 : f32
    %11 = vector.broadcast %cst_5 : f32 to vector<16x128xf32>
    %12 = arith.maximumf %10, %11 : vector<16x128xf32>
    %13 = arith.subf %7, %12 : vector<16x128xf32>
    %14 = arith.mulf %4, %13 : vector<16x128xf32>
    %15 = arith.addf %14, %12 : vector<16x128xf32>
    %c1_i32 = arith.constant 1 : i32
    %16 = arith.muli %arg0, %c1_i32 : i32
    %17 = arith.addi %16, %arg1 : i32
    %c16_i32 = arith.constant 16 : i32
    %18 = arith.muli %17, %c16_i32 : i32
    %c16_i32_6 = arith.constant 16 : i32
    %19 = arith.addi %18, %c16_i32_6 : i32
    %c16_i32_7 = arith.constant 16 : i32
    %20 = arith.cmpi sgt, %19, %c16_i32_7 : i32
    %true = arith.constant true
    %21 = arith.xori %20, %true : i1
    %22 = arith.extui %21 : i1 to i32
    %c0_i32_8 = arith.constant 0 : i32
    %23 = arith.cmpi ne, %22, %c0_i32_8 : i32
    scf.if %23 {
      %c0_10 = arith.constant 0 : index
      %c0_11 = arith.constant 0 : index
      %c0_12 = arith.constant 0 : index
      %26 = vector.load %arg4[%c0_10, %c0_11, %c0_12] : memref<1x8x128xf32, #tpu.memory_space<vmem>>, vector<1x8x128xf32>
      %27 = vector.shape_cast %26 : vector<1x8x128xf32> to vector<8x128xf32>
      %28 = vector.shape_cast %15 : vector<16x128xf32> to vector<2x8x128xf32>
      %cst_13 = arith.constant dense<0.000000e+00> : vector<8x128xf32>
      %29 = vector.multi_reduction <add>, %28, %cst_13 [0] : vector<2x8x128xf32> to vector<8x128xf32>
      %30 = arith.addf %27, %29 : vector<8x128xf32>
      %c0_14 = arith.constant 0 : index
      %c0_15 = arith.constant 0 : index
      %c0_16 = arith.constant 0 : index
      %31 = vector.load %arg4[%c0_14, %c0_15, %c0_16] : memref<1x8x128xf32, #tpu.memory_space<vmem>>, vector<1x8x128xf32>
      %32 = vector.shape_cast %31 : vector<1x8x128xf32> to vector<8x128xf32>
      %33 = vector.shape_cast %30 : vector<8x128xf32> to vector<1x8x128xf32>
      tpu.vector_store %arg4[%c0_14, %c0_15, %c0_16], %33 {strides = array<i32>} : memref<1x8x128xf32, #tpu.memory_space<vmem>>, vector<1x8x128xf32>,
    } else {
    }
    %24 = arith.extui %20 : i1 to i32
    %c0_i32_9 = arith.constant 0 : i32
    %25 = arith.cmpi ne, %24, %c0_i32_9 : i32
    scf.if %25 {
      %26 = tpu.iota {dimensions = array<i32: 0>} : vector<16x128xi32>
      %27 = vector.broadcast %18 : i32 to vector<16x128xi32>
      %28 = arith.addi %27, %26 : vector<16x128xi32>
      %c0_10 = arith.constant 0 : index
      %c0_11 = arith.constant 0 : index
      %c0_12 = arith.constant 0 : index
      %29 = vector.load %arg4[%c0_10, %c0_11, %c0_12] : memref<1x8x128xf32, #tpu.memory_space<vmem>>, vector<1x8x128xf32>
      %30 = vector.shape_cast %29 : vector<1x8x128xf32> to vector<8x128xf32>
      %c16_i32_13 = arith.constant 16 : i32
      %31 = vector.broadcast %c16_i32_13 : i32 to vector<16x128xi32>
      %32 = arith.cmpi slt, %28, %31 : vector<16x128xi32>
      %cst_14 = arith.constant 0.000000e+00 : f32
      %33 = vector.broadcast %cst_14 : f32 to vector<16x128xf32>
      %34 = arith.select %32, %15, %33 : vector<16x128xi1>, vector<16x128xf32>
      %35 = vector.shape_cast %34 : vector<16x128xf32> to vector<2x8x128xf32>
      %cst_15 = arith.constant dense<0.000000e+00> : vector<8x128xf32>
      %36 = vector.multi_reduction <add>, %35, %cst_15 [0] : vector<2x8x128xf32> to vector<8x128xf32>
      %37 = arith.addf %30, %36 : vector<8x128xf32>
      %c0_16 = arith.constant 0 : index
      %c0_17 = arith.constant 0 : index
      %c0_18 = arith.constant 0 : index
      %38 = vector.load %arg4[%c0_16, %c0_17, %c0_18] : memref<1x8x128xf32, #tpu.memory_space<vmem>>, vector<1x8x128xf32>
      %39 = vector.shape_cast %38 : vector<1x8x128xf32> to vector<8x128xf32>
      %40 = vector.shape_cast %37 : vector<8x128xf32> to vector<1x8x128xf32>
      tpu.vector_store %arg4[%c0_16, %c0_17, %c0_18], %40 {strides = array<i32>} : memref<1x8x128xf32, #tpu.memory_space<vmem>>, vector<1x8x128xf32>,
    } else {
    }
    return
  }
  func.func @transform_0(%arg0: i32, %arg1: i32) -> (i32, i32) {
    %c1_i32 = arith.constant 1 : i32
    %0 = arith.muli %arg0, %c1_i32 : i32
    %1 = arith.addi %0, %arg1 : i32
    %c0_i32 = arith.constant 0 : i32
    %2 = arith.minsi %1, %c0_i32 : i32
    %c0_i32_0 = arith.constant 0 : i32
    %c0_i32_1 = arith.constant 0 : i32
    return %2, %c0_i32_0 : i32, i32
  }
  func.func @transform_1(%arg0: i32, %arg1: i32) -> (i32, i32) {
    %c1_i32 = arith.constant 1 : i32
    %0 = arith.muli %arg0, %c1_i32 : i32
    %1 = arith.addi %0, %arg1 : i32
    %c0_i32 = arith.constant 0 : i32
    %2 = arith.minsi %1, %c0_i32 : i32
    %c0_i32_0 = arith.constant 0 : i32
    %c0_i32_1 = arith.constant 0 : i32
    return %2, %c0_i32_0 : i32, i32
  }
  func.func @transform_2(%arg0: i32, %arg1: i32) -> (i32, i32, i32) {
    %c0_i32 = arith.constant 0 : i32
    %c0_i32_0 = arith.constant 0 : i32
    %c0_i32_1 = arith.constant 0 : i32
    return %arg0, %c0_i32, %c0_i32_0 : i32, i32, i32
  }
}

</mosaic_0001>

<llo_original>
// kernel: tpu_custom_call.1
$region0: #{tpu_custom_call.1}
  #allocation0 [shape = 'u32[]', space=smem, size = 0x4, offset = 0x4, fixed_abs, tag = 'smem constant byte address 0x4 - core index']
  #allocation1 [shape = 'u32[144,128]{1,0:T(1,128)}', space=vmem, size = 0x12000, scoped, tag = 'internal scratch']
  %s0 = inlined_call_operand.hbm [shape: f32[16,128], index: 0, kind: input, shape index: {}]
  %s1 = inlined_call_operand.hbm [shape: f32[16,128], index: 1, kind: input, shape index: {}]
  %s2 = inlined_call_operand.hbm [shape: f32[1,8,128], index: 2, kind: output, shape index: {}]
  %s3 = sld [smem:[#allocation0]]
  $region38: #{tpu_custom_call.1} parent=0
    _
  %s5 = ssub.s32 1, %s3
  %s6 = scalar_select 0, %s5, %s3
  $region1: #{tpu_custom_call.1} parent=0
    #allocation2 [shape = 'u8[8192]{0}', space=vmem, size = 0x2000, scoped, tag = 'input window, operand 0, single buffered']
    #allocation3 [shape = 's32[1]{0}', space=sflag, size = 0x4, scoped, tag = 'scoped memory for tpu_custom_call.1']
    #allocation4 [shape = 's32[1]{0}', space=sflag, size = 0x4, scoped, tag = 'scoped memory for tpu_custom_call.1']
    #allocation5 [shape = 'u8[8192]{0}', space=vmem, size = 0x2000, scoped, tag = 'input window, operand 1, single buffered']
    #allocation6 [shape = 's32[1]{0}', space=sflag, size = 0x4, scoped, tag = 'scoped memory for tpu_custom_call.1']
    #allocation7 [shape = 'u8[4096]{0}', space=vmem, size = 0x1000, scoped, tag = 'output window, operand 0, single buffered']
    %7 = vsyncpa [#allocation3], 0
    %8 = vsyncpa [#allocation6], 0
    %9 = vsyncpa [#allocation4], 0
    // Predicated region
    $region2: #{tpu_custom_call.1} parent=1 // pred_check
      _
    $region3: #{tpu_custom_call.1} parent=1 // pred_check_branch
      %11 = sbr.rel (0) target = $region5
    $region4: #{tpu_custom_call.1} parent=1 // pred_region
      %s12 = sadd.s32 0, 0
      %p13 = scmp.lt.s32.totalorder %s12, 0
      %s14 = scalar_select %p13, %s12, 0
      %s15 = smul.u32 2, %s14
      %s17 = ssub.s32 256, 256
      %18 = vsyncadd [#allocation3], %s17
      %s19 = smul.addr %s15, 128
      %s20 = scalar_lea.hbm %s0, %s19
      %s21 = sshll.u32 [#allocation2], 4
      %s22 = int_to_ptr.vmem [resolvable:$true] %s21
      %27 = dma.hbm_to_vmem [thread:$0]  %s20, 256, %s22, [#allocation3], 128, 128, 8
    $region5: #{tpu_custom_call.1} parent=1 // pred_fallthru
      _
    // Predicated region
    $region6: #{tpu_custom_call.1} parent=1 // pred_check
      _
    $region7: #{tpu_custom_call.1} parent=1 // pred_check_branch
      %29 = sbr.rel (0) target = $region9
    $region8: #{tpu_custom_call.1} parent=1 // pred_region
      %s30 = sadd.s32 0, 0
      %p31 = scmp.lt.s32.totalorder %s30, 0
      %s32 = scalar_select %p31, %s30, 0
      %s33 = smul.u32 2, %s32
      %s35 = ssub.s32 256, 256
      %36 = vsyncadd [#allocation6], %s35
      %s37 = smul.addr %s33, 128
      %s38 = scalar_lea.hbm %s1, %s37
      %s39 = sshll.u32 [#allocation5], 4
      %s40 = int_to_ptr.vmem [resolvable:$true] %s39
      %45 = dma.hbm_to_vmem [thread:$0]  %s38, 256, %s40, [#allocation6], 128, 128, 8
    $region9: #{tpu_custom_call.1} parent=1 // pred_fallthru
      _
    // Predicated region
    $region10: #{tpu_custom_call.1} parent=1 // pred_check
      _
    $region11: #{tpu_custom_call.1} parent=1 // pred_check_branch
      %47 = sbr.rel (0) target = $region13
    $region12: #{tpu_custom_call.1} parent=1 // pred_region
      %48 = dma.done [#allocation3], 256
    $region13: #{tpu_custom_call.1} parent=1 // pred_fallthru
      _
    // Predicated region
    $region14: #{tpu_custom_call.1} parent=1 // pred_check
      _
    $region15: #{tpu_custom_call.1} parent=1 // pred_check_branch
      %50 = sbr.rel (0) target = $region17
    $region16: #{tpu_custom_call.1} parent=1 // pred_region
      %51 = dma.done [#allocation6], 256
    $region17: #{tpu_custom_call.1} parent=1 // pred_fallthru
      _
    %s52 = sadd.s32 0, 0
    %p53 = scmp.lt.s32.totalorder %s52, 0
    %s54 = scalar_select %p53, %s52, 0
    %s55 = smul.u32 2, %s54
    %s56 = sadd.s32 0, 0
    %p57 = scmp.lt.s32.totalorder %s56, 0
    %s58 = scalar_select %p57, %s56, 0
    %s59 = smul.u32 2, %s58
    %p60 = scmp.eq.s32.totalorder 0, 0
    // Predicated region
    $region18: #{tpu_custom_call.1} parent=1 // pred_check
      %p61 = pneg %p60
    $region19: #{tpu_custom_call.1} parent=1 // pred_check_branch
      %63 = sbr.rel (%p61) target = $region21
    $region20: #{tpu_custom_call.1} parent=1 // pred_region
      %64 = vst [vmem:[#allocation7] sm:$0xff] 0.0
    $region21: #{tpu_custom_call.1} parent=1 // pred_fallthru
      _
    %v65 = vld [vmem:[#allocation2] sm:$0xff]
    %v66 = vld [vmem:[#allocation2 + $0x8] sm:$0xff]
    %v67 = vld [vmem:[#allocation5] sm:$0xff]
    %v68 = vld [vmem:[#allocation5 + $0x8] sm:$0xff]
    %v69 = vlog2.pop %v65
    %v70 = vmul.f32 %v69, 0.6931472
    %v71 = vlog2.pop %v66
    %v72 = vmul.f32 %v71, 0.6931472
    %v73 = vmax.f32 %v70, -100.0
    %v74 = vmax.f32 %v72, -100.0
    %v75 = vsub.f32 0.0, %v65
    %v76 = vsub.f32 0.0, %v66
    %v77 = vadd.f32 %v75, 1.0
    %v78 = vlog2.pop %v77
    %v79 = vmul.f32 %v78, 0.6931472
    %v80 = vmul.f32 -0.5, %v75
    %v81 = vadd.f32 %v80, 1.0
    %v82 = vmul.f32 %v81, %v75
    %v83 = vand.u32 2147483647, %v75
    %vm84 = vcmp.lt.f32.partialorder %v83, 0.0004427343
    %v85 = vsel %vm84, %v82, %v79
    %v86 = vadd.f32 %v76, 1.0
    %v87 = vlog2.pop %v86
    %v88 = vmul.f32 %v87, 0.6931472
    %v89 = vmul.f32 -0.5, %v76
    %v90 = vadd.f32 %v89, 1.0
    %v91 = vmul.f32 %v90, %v76
    %v92 = vand.u32 2147483647, %v76
    %vm93 = vcmp.lt.f32.partialorder %v92, 0.0004427343
    %v94 = vsel %vm93, %v91, %v88
    %v95 = vmax.f32 %v85, -100.0
    %v96 = vmax.f32 %v94, -100.0
    %v97 = vsub.f32 %v73, %v95
    %v98 = vsub.f32 %v74, %v96
    %v99 = vmul.f32 %v67, %v97
    %v100 = vmul.f32 %v68, %v98
    %v101 = vadd.f32 %v99, %v95
    %v102 = vadd.f32 %v100, %v96
    %s103 = sadd.s32 0, 0
    %s104 = smul.u32 %s103, 16
    %s105 = sadd.s32 %s104, 16
    %p106 = scmp.gt.s32.totalorder %s105, 16
    %p107 = scmp.le.s32.totalorder %s105, 16
    // Predicated region
    $region22: #{tpu_custom_call.1} parent=1 // pred_check
      %p108 = pneg %p107
    $region23: #{tpu_custom_call.1} parent=1 // pred_check_branch
      %110 = sbr.rel (%p108) target = $region25
    $region24: #{tpu_custom_call.1} parent=1 // pred_region
      %v111 = vld [vmem:[#allocation7] sm:$0xff]
      %v112 = vadd.f32 %v101, %v102
      %v113 = vadd.f32 %v111, %v112
      %114 = vst [vmem:[#allocation7] sm:$0xff] %v113
    $region25: #{tpu_custom_call.1} parent=1 // pred_fallthru
      _
    // Predicated region
    $region26: #{tpu_custom_call.1} parent=1 // pred_check
      %p115 = pneg %p106
    $region27: #{tpu_custom_call.1} parent=1 // pred_check_branch
      %117 = sbr.rel (%p115) target = $region29
    $region28: #{tpu_custom_call.1} parent=1 // pred_region
      %v118 = vlaneseq
      %v119 = vshrl.u32 %v118, 7
      %v120 = vadd.s32 %v119, 8
      %v121 = vstv %s104
      %v122 = vadd.s32 %v121, %v119
      %v123 = vadd.s32 %v121, %v120
      %v124 = vld [vmem:[#allocation7] sm:$0xff]
      %vm125 = vcmp.lt.s32.totalorder %v122, 16
      %vm126 = vcmp.lt.s32.totalorder %v123, 16
      %v127 = vsel %vm125, %v101, 0.0
      %v128 = vsel %vm126, %v102, 0.0
      %v129 = vadd.f32 %v127, %v128
      %v130 = vadd.f32 %v124, %v129
      %131 = vst [vmem:[#allocation7] sm:$0xff] %v130
    $region29: #{tpu_custom_call.1} parent=1 // pred_fallthru
      _
    // Predicated region
    $region30: #{tpu_custom_call.1} parent=1 // pred_check
      _
    $region31: #{tpu_custom_call.1} parent=1 // pred_check_branch
      %133 = sbr.rel (0) target = $region33
    $region32: #{tpu_custom_call.1} parent=1 // pred_region
      %s135 = ssub.s32 128, 128
      %136 = vsyncadd [#allocation4], %s135
      %s138 = sshll.u32 [#allocation7], 4
      %s139 = int_to_ptr.vmem [resolvable:$true] %s138
      %141 = dma.vmem_to_hbm [thread:$0]  %s139, 128, %s2, [#allocation4]
    $region33: #{tpu_custom_call.1} parent=1 // pred_fallthru
      _
    // Predicated region
    $region34: #{tpu_custom_call.1} parent=1 // pred_check
      _
    $region35: #{tpu_custom_call.1} parent=1 // pred_check_branch
      %143 = sbr.rel (0) target = $region37
    $region36: #{tpu_custom_call.1} parent=1 // pred_region
      %144 = dma.done [#allocation4], 128
    $region37: #{tpu_custom_call.1} parent=1 // pred_fallthru
      _
    %145 = vsyncpa [#allocation3], 1
    %146 = vsyncpa [#allocation6], 1
    %147 = vsyncpa [#allocation4], 1

</llo_original>
